<compile_context>
chip_gen: v7x
topology: tpu7x:2x2x1
jax: 0.10.0
libtpu: 0.0.40
codegen_flags: <defaults>
</compile_context>

<pallas_src>
import jax
import jax.numpy as jnp
from jax.experimental import pallas as pl
from jax.experimental.pallas import tpu as pltpu


def _round_up(x, m):
    return ((x + m - 1) // m) * m


def default_compute_dtype():
    """bf16 on v6e/v7x (native bf16 VPU + wide MXU), f32 on v5e/older (no bf16 VPU)."""
    try:
        kind = jax.devices()[0].device_kind.lower()
    except Exception:
        return jnp.float32
    if ("v6" in kind) or ("v7" in kind) or ("7x" in kind):
        return jnp.bfloat16
    return jnp.float32


def duel_qnet_kernel(x_ref, w1_ref, w2_ref, wh1_ref, wq_ref, b_ref, q_ref):
    """One batch tile of the dueling-DQN forward.

    x_ref   : (TB, obs)   activations for this batch tile (weight dtype)
    w1_ref  : (obs, S)    feature layer 1
    w2_ref  : (S, E)      feature layer 2
    wh1_ref : (E, 2S)     fused [value_l1 | adv_l1]
    wq_ref  : (2S, OUT)   fused final weight with the dueling combine folded in
    b_ref   : (4, PACK)   packed biases (rows: b1, b2, bh1, bq), f32
    q_ref   : (TB, OUT)   output Q-values
    """
    S = w1_ref.shape[1]
    E = w2_ref.shape[1]
    H = wh1_ref.shape[1]        # 2 * start_end_dim
    OUT = wq_ref.shape[1]       # action_size (or 128 when lane-dense)

    in_dtype = w1_ref.dtype     # f32, or bf16 on v6e/v7x
    biases = b_ref[...]         # (4, PACK) f32

    x = x_ref[...].astype(in_dtype)

    # feature_layer: Linear -> ReLU -> Linear -> ReLU  (f32 accumulation)
    h = jnp.dot(x, w1_ref[...], preferred_element_type=jnp.float32)
    h = jnp.maximum(h + biases[0:1, :S], 0.0)
    f = jnp.dot(h.astype(in_dtype), w2_ref[...], preferred_element_type=jnp.float32)
    f = jnp.maximum(f + biases[1:2, :E], 0.0)

    # fused value+advantage hidden layer, then the fold-combined final matmul:
    # q = hh @ wq + bq  directly equals  value + adv - mean(adv).
    hh = jnp.dot(f.astype(in_dtype), wh1_ref[...], preferred_element_type=jnp.float32)
    hh = jnp.maximum(hh + biases[2:3, :H], 0.0)
    q = jnp.dot(hh.astype(in_dtype), wq_ref[...], preferred_element_type=jnp.float32)
    q_ref[...] = (q + biases[3:4, :OUT]).astype(q_ref.dtype)


def init_params(key, obs_size, action_size, start_end_dim=32, emb_dim=64):
    """Deterministic synthetic parameters (PyTorch nn.Linear style init).

    Weights are created in PyTorch layout [out, in] and transposed to [in, out]
    so the kernel computes y = x @ W + b; biases are 1-D [out].
    """
    def linear(k, in_f, out_f):
        kw, kb = jax.random.split(k)
        bound = 1.0 / (in_f ** 0.5)
        w = jax.random.uniform(kw, (out_f, in_f), jnp.float32, -bound, bound)
        b = jax.random.uniform(kb, (out_f,), jnp.float32, -bound, bound)
        return w.T, b

    keys = jax.random.split(key, 6)
    w1, b1 = linear(keys[0], obs_size, start_end_dim)
    w2, b2 = linear(keys[1], start_end_dim, emb_dim)
    wv1, bv1 = linear(keys[2], emb_dim, start_end_dim)
    wv2, bv2 = linear(keys[3], start_end_dim, 1)
    wa1, ba1 = linear(keys[4], emb_dim, start_end_dim)
    wa2, ba2 = linear(keys[5], start_end_dim, action_size)
    return (w1, b1, w2, b2, wv1, bv1, wv2, bv2, wa1, ba1, wa2, ba2)


def prepare_kernel_params(raw_params, compute_dtype=jnp.float32, lane_dense_output=False):
    """One-time (plain JAX) head fusion + dueling-combine fold + bias packing.

    Returns (w1, w2, wh1, wq, bias_pack):
      wh1 = [wv1 | wa1]                                  : [E, 2S]
      wq  = [[broadcast(wv2)], [wa2 - mean_cols(wa2)]]   : [2S, OUT]
      bq  = bv2 + ba2 - mean(ba2)                        : [OUT]
    so that q = relu(...) @ wq + bq == value + adv - mean(adv).

    lane_dense_output pads wq/bq to 128 output lanes (unmasked vst, dense writeback);
    only enable if profiling shows the store path binding (it grows output HBM bytes).
    """
    (w1, b1, w2, b2, wv1, bv1, wv2, bv2, wa1, ba1, wa2, ba2) = raw_params
    S = wv1.shape[1]            # start_end_dim
    A = wa2.shape[1]            # action_size

    wh1 = jnp.concatenate([wv1, wa1], axis=1)                     # [E, 2S]
    bh1 = jnp.concatenate([bv1, ba1], axis=0)                     # [2S]

    # Fold the dueling combine into the last matmul (exact in exact arithmetic).
    wq_val = jnp.broadcast_to(wv2, (S, A))                        # value column -> every action
    wq_adv = wa2 - jnp.mean(wa2, axis=1, keepdims=True)           # advantage minus its mean
    wq = jnp.concatenate([wq_val, wq_adv], axis=0)                # [2S, A]
    bq = bv2[0] + ba2 - jnp.mean(ba2)                             # [A]

    out_cols = A
    if lane_dense_output:
        out_cols = _round_up(A, 128)
        wq = jnp.pad(wq, ((0, 0), (0, out_cols - A)))
        bq = jnp.pad(bq, (0, out_cols - A))

    pack_w = _round_up(max(w1.shape[1], w2.shape[1], wh1.shape[1], out_cols), 128)

    def _row(b):
        assert b.shape[0] <= pack_w, "bias wider than bias-pack row"
        return jnp.pad(b, (0, pack_w - b.shape[0]))

    bias_pack = jnp.stack([_row(b1), _row(b2), _row(bh1), _row(bq)]).astype(jnp.float32)

    cast = lambda w: w.astype(compute_dtype)
    return (cast(w1), cast(w2), cast(wh1), cast(wq), bias_pack)


def duel_qnetwork_forward(x, kernel_params, action_size, *, block_batch=1024):
    """Dueling Q-network forward. x may have trailing obs dims; flattened to [B, -1]."""
    w1, w2, wh1, wq, bias_pack = kernel_params
    obs = w1.shape[0]
    S, E, H, OUT = w1.shape[1], w2.shape[1], wh1.shape[1], wq.shape[1]

    batch = x.shape[0]
    x2d = x.reshape(batch, -1).astype(w1.dtype)
    assert x2d.shape[1] == obs, "flattened obs size mismatch"

    # Batch tile: large (default 1024) to amortize the ~0.35us per-grid-step overhead
    # and give the MXU a big M, but capped so large batches always yield >=2 grid
    # steps -> the "parallel" axis can be split across v7x's 2 TensorCores.
    # VMEM budget: the x tile is lane-padded obs->128, so 2 buffers * tb*128*4B
    # (~1 MiB at tb=1024) plus ~32 KiB of resident weights -- far under every
    # generation's scoped-VMEM default, so no vmem_limit_bytes override is needed.
    tb = min(block_batch, _round_up(pl.cdiv(batch, 2), 8))
    tb = max(tb, 8)
    padded = _round_up(batch, tb)
    if padded != batch:
        x2d = jnp.pad(x2d, ((0, padded - batch), (0, 0)))

    grid = (padded // tb,)

    itemsize = jnp.dtype(w1.dtype).itemsize
    flops = 2 * padded * (obs * S + S * E + E * H + H * OUT)
    bytes_accessed = (
        x2d.size * itemsize
        + padded * OUT * 4
        + (w1.size + w2.size + wh1.size + wq.size) * itemsize
        + bias_pack.size * 4
    )

    q_padded = pl.pallas_call(
        duel_qnet_kernel,
        out_shape=jax.ShapeDtypeStruct((padded, OUT), jnp.float32),
        grid=grid,
        in_specs=[
            pl.BlockSpec((tb, obs), lambda i: (i, 0)),       # x: new tile per grid step
            pl.BlockSpec((obs, S), lambda i: (0, 0)),        # weights: VMEM-resident
            pl.BlockSpec((S, E), lambda i: (0, 0)),
            pl.BlockSpec((E, H), lambda i: (0, 0)),
            pl.BlockSpec((H, OUT), lambda i: (0, 0)),
            pl.BlockSpec(bias_pack.shape, lambda i: (0, 0)),
        ],
        out_specs=pl.BlockSpec((tb, OUT), lambda i: (i, 0)),
        compiler_params=pltpu.CompilerParams(
            # Batch tiles are independent -> megacore split on v7x; no-op on v5e/v6e.
            dimension_semantics=("parallel",),
        ),
        cost_estimate=pl.CostEstimate(
            flops=int(flops), transcendentals=0, bytes_accessed=int(bytes_accessed)),
    )(x2d, w1, w2, wh1, wq, bias_pack)

    return q_padded[:batch, :action_size]


def reference_forward(x, raw_params):
    """Pure-JAX reference (unfused, matches the PyTorch module exactly)."""
    (w1, b1, w2, b2, wv1, bv1, wv2, bv2, wa1, ba1, wa2, ba2) = raw_params
    batch = x.shape[0]
    f = x.reshape(batch, -1).astype(jnp.float32)
    f = jnp.maximum(f @ w1 + b1, 0.0)
    f = jnp.maximum(f @ w2 + b2, 0.0)
    value = jnp.maximum(f @ wv1 + bv1, 0.0) @ wv2 + bv2
    adv = jnp.maximum(f @ wa1 + ba1, 0.0) @ wa2 + ba2
    return value + adv - adv.mean(axis=-1, keepdims=True)


if __name__ == "__main__":
    key = jax.random.PRNGKey(0)
    kx, kx2, kp = jax.random.split(key, 3)

    # Shapes consistent with the module defaults: obs = 4*8 = 32 features,
    # 6 actions, hid_layer=1, start_end_dim=32, emb_dim=64.
    # TODO(synk): hid_layer > 1 (extra emb->emb feature layers) not implemented;
    # this kernel covers the module's default hid_layer=1.
    obs_shape, action_size = (4, 8), 6
    obs_size = obs_shape[0] * obs_shape[1]

    raw_params = init_params(kp, obs_size, action_size)

    # f32 path: exact comparison against the unfused reference.
    kp_f32 = prepare_kernel_params(raw_params, compute_dtype=jnp.float32)

    # Tiny batch (single grid step, padded to one 8-row tile).
    x_small = jax.random.normal(kx, (2,) + obs_shape, dtype=jnp.float32)
    q_small = jax.block_until_ready(
        duel_qnetwork_forward(x_small, kp_f32, action_size))
    ref_small = reference_forward(x_small, raw_params)
    assert q_small.shape == (2, action_size)
    assert jnp.allclose(q_small, ref_small, atol=1e-5, rtol=1e-5), \
        "small-batch mismatch vs reference"

    # Larger, non-tile-divisible batch exercising the pipelined 2-step grid + padding.
    x_big = jax.random.normal(kx2, (300,) + obs_shape, dtype=jnp.float32)
    q_big = jax.block_until_ready(
        duel_qnetwork_forward(x_big, kp_f32, action_size))
    ref_big = reference_forward(x_big, raw_params)
    assert q_big.shape == (300, action_size)
    assert jnp.allclose(q_big, ref_big, atol=1e-4, rtol=1e-4), \
        "large-batch mismatch vs reference"

    # Generation-appropriate compute dtype: bf16 weights/inputs on v6e/v7x
    # (f32 accumulation preserved), f32 on v5e/older.  Looser tolerance for bf16.
    auto_dtype = default_compute_dtype()
    if auto_dtype != jnp.float32:
        kp_auto = prepare_kernel_params(raw_params, compute_dtype=auto_dtype)
        q_bf = jax.block_until_ready(
            duel_qnetwork_forward(x_big, kp_auto, action_size))
        assert q_bf.shape == (300, action_size)
        assert jnp.allclose(q_bf, ref_big, atol=1e-1, rtol=1e-1), \
            "bf16-path mismatch vs f32 reference (beyond bf16 tolerance)"

    print("KERNEL_OK")
</pallas_src>

<mosaic_0001>
module attributes {stable_mosaic.version = 11 : i64} {
  func.func @duel_qnet_kernel(%arg0: i32, %arg1: memref<8x32xf32, #tpu.memory_space<vmem>>, %arg2: memref<32x32xf32, #tpu.memory_space<vmem>>, %arg3: memref<32x64xf32, #tpu.memory_space<vmem>>, %arg4: memref<64x64xf32, #tpu.memory_space<vmem>>, %arg5: memref<64x6xf32, #tpu.memory_space<vmem>>, %arg6: memref<4x128xf32, #tpu.memory_space<vmem>>, %arg7: memref<8x6xf32, #tpu.memory_space<vmem>>) attributes {dimension_semantics = [#tpu.dimension_semantics<parallel>], iteration_bounds = array<i64: 1>, scalar_prefetch = 0 : i64, scratch_operands = 0 : i64, tpu.core_type = #tpu.core_type<tc>, window_params = [{transform_indices = @transform_0, window_bounds = array<i64: 8, 32>}, {pipeline_mode = #tpu.pipeline_mode<synchronous>, transform_indices = @transform_1, window_bounds = array<i64: 32, 32>}, {pipeline_mode = #tpu.pipeline_mode<synchronous>, transform_indices = @transform_2, window_bounds = array<i64: 32, 64>}, {pipeline_mode = #tpu.pipeline_mode<synchronous>, transform_indices = @transform_3, window_bounds = array<i64: 64, 64>}, {pipeline_mode = #tpu.pipeline_mode<synchronous>, transform_indices = @transform_4, window_bounds = array<i64: 64, 6>}, {pipeline_mode = #tpu.pipeline_mode<synchronous>, transform_indices = @transform_5, window_bounds = array<i64: 4, 128>}, {transform_indices = @transform_6, window_bounds = array<i64: 8, 6>}]} {
    %c0 = arith.constant 0 : index
    %c0_0 = arith.constant 0 : index
    %0 = vector.load %arg6[%c0, %c0_0] : memref<4x128xf32, #tpu.memory_space<vmem>>, vector<4x128xf32>
    %c0_1 = arith.constant 0 : index
    %c0_2 = arith.constant 0 : index
    %1 = vector.load %arg1[%c0_1, %c0_2] : memref<8x32xf32, #tpu.memory_space<vmem>>, vector<8x32xf32>
    %c0_3 = arith.constant 0 : index
    %c0_4 = arith.constant 0 : index
    %2 = vector.load %arg2[%c0_3, %c0_4] : memref<32x32xf32, #tpu.memory_space<vmem>>, vector<32x32xf32>
    %cst = arith.constant dense<0.000000e+00> : vector<8x32xf32>
    %3 = tpu.matmul %1, %2, %cst {dimension_numbers = #tpu.dot_dimension_numbers<[1], [0], [0], [1], [0, 0, 1, 1], [], []>} : vector<8x32xf32>, vector<32x32xf32>, vector<8x32xf32> -> vector<8x32xf32>
    %4 = vector.extract_strided_slice %0 {offsets = [0, 0], sizes = [1, 32], strides = [1, 1]} : vector<4x128xf32> to vector<1x32xf32>
    %5 = vector.broadcast %4 : vector<1x32xf32> to vector<8x32xf32>
    %6 = arith.addf %3, %5 : vector<8x32xf32>
    %cst_5 = arith.constant 0.000000e+00 : f32
    %7 = vector.broadcast %cst_5 : f32 to vector<8x32xf32>
    %8 = arith.maximumf %6, %7 : vector<8x32xf32>
    %c0_6 = arith.constant 0 : index
    %c0_7 = arith.constant 0 : index
    %9 = vector.load %arg3[%c0_6, %c0_7] : memref<32x64xf32, #tpu.memory_space<vmem>>, vector<32x64xf32>
    %cst_8 = arith.constant dense<0.000000e+00> : vector<8x64xf32>
    %10 = tpu.matmul %8, %9, %cst_8 {dimension_numbers = #tpu.dot_dimension_numbers<[1], [0], [0], [1], [0, 0, 1, 1], [], []>} : vector<8x32xf32>, vector<32x64xf32>, vector<8x64xf32> -> vector<8x64xf32>
    %11 = vector.extract_strided_slice %0 {offsets = [1, 0], sizes = [1, 64], strides = [1, 1]} : vector<4x128xf32> to vector<1x64xf32>
    %12 = vector.broadcast %11 : vector<1x64xf32> to vector<8x64xf32>
    %13 = arith.addf %10, %12 : vector<8x64xf32>
    %cst_9 = arith.constant 0.000000e+00 : f32
    %14 = vector.broadcast %cst_9 : f32 to vector<8x64xf32>
    %15 = arith.maximumf %13, %14 : vector<8x64xf32>
    %c0_10 = arith.constant 0 : index
    %c0_11 = arith.constant 0 : index
    %16 = vector.load %arg4[%c0_10, %c0_11] : memref<64x64xf32, #tpu.memory_space<vmem>>, vector<64x64xf32>
    %cst_12 = arith.constant dense<0.000000e+00> : vector<8x64xf32>
    %17 = tpu.matmul %15, %16, %cst_12 {dimension_numbers = #tpu.dot_dimension_numbers<[1], [0], [0], [1], [0, 0, 1, 1], [], []>} : vector<8x64xf32>, vector<64x64xf32>, vector<8x64xf32> -> vector<8x64xf32>
    %18 = vector.extract_strided_slice %0 {offsets = [2, 0], sizes = [1, 64], strides = [1, 1]} : vector<4x128xf32> to vector<1x64xf32>
    %19 = vector.broadcast %18 : vector<1x64xf32> to vector<8x64xf32>
    %20 = arith.addf %17, %19 : vector<8x64xf32>
    %cst_13 = arith.constant 0.000000e+00 : f32
    %21 = vector.broadcast %cst_13 : f32 to vector<8x64xf32>
    %22 = arith.maximumf %20, %21 : vector<8x64xf32>
    %c0_14 = arith.constant 0 : index
    %c0_15 = arith.constant 0 : index
    %23 = vector.load %arg5[%c0_14, %c0_15] : memref<64x6xf32, #tpu.memory_space<vmem>>, vector<64x6xf32>
    %cst_16 = arith.constant dense<0.000000e+00> : vector<8x6xf32>
    %24 = tpu.matmul %22, %23, %cst_16 {dimension_numbers = #tpu.dot_dimension_numbers<[1], [0], [0], [1], [0, 0, 1, 1], [], []>} : vector<8x64xf32>, vector<64x6xf32>, vector<8x6xf32> -> vector<8x6xf32>
    %25 = vector.extract_strided_slice %0 {offsets = [3, 0], sizes = [1, 6], strides = [1, 1]} : vector<4x128xf32> to vector<1x6xf32>
    %26 = vector.broadcast %25 : vector<1x6xf32> to vector<8x6xf32>
    %27 = arith.addf %24, %26 : vector<8x6xf32>
    %c0_17 = arith.constant 0 : index
    %c0_18 = arith.constant 0 : index
    %28 = vector.load %arg7[%c0_17, %c0_18] : memref<8x6xf32, #tpu.memory_space<vmem>>, vector<8x6xf32>
    tpu.vector_store %arg7[%c0_17, %c0_18], %27 {strides = array<i32>} : memref<8x6xf32, #tpu.memory_space<vmem>>, vector<8x6xf32>,
    return
  }
  func.func @transform_0(%arg0: i32) -> (i32, i32) {
    %c0_i32 = arith.constant 0 : i32
    %c0_i32_0 = arith.constant 0 : i32
    return %arg0, %c0_i32 : i32, i32
  }
  func.func @transform_1(%arg0: i32) -> (i32, i32) {
    %c0_i32 = arith.constant 0 : i32
    %c0_i32_0 = arith.constant 0 : i32
    %c0_i32_1 = arith.constant 0 : i32
    return %c0_i32, %c0_i32_0 : i32, i32
  }
  func.func @transform_2(%arg0: i32) -> (i32, i32) {
    %c0_i32 = arith.constant 0 : i32
    %c0_i32_0 = arith.constant 0 : i32
    %c0_i32_1 = arith.constant 0 : i32
    return %c0_i32, %c0_i32_0 : i32, i32
  }
  func.func @transform_3(%arg0: i32) -> (i32, i32) {
    %c0_i32 = arith.constant 0 : i32
    %c0_i32_0 = arith.constant 0 : i32
    %c0_i32_1 = arith.constant 0 : i32
    return %c0_i32, %c0_i32_0 : i32, i32
  }
  func.func @transform_4(%arg0: i32) -> (i32, i32) {
    %c0_i32 = arith.constant 0 : i32
    %c0_i32_0 = arith.constant 0 : i32
    %c0_i32_1 = arith.constant 0 : i32
    return %c0_i32, %c0_i32_0 : i32, i32
  }
  func.func @transform_5(%arg0: i32) -> (i32, i32) {
    %c0_i32 = arith.constant 0 : i32
    %c0_i32_0 = arith.constant 0 : i32
    %c0_i32_1 = arith.constant 0 : i32
    return %c0_i32, %c0_i32_0 : i32, i32
  }
  func.func @transform_6(%arg0: i32) -> (i32, i32) {
    %c0_i32 = arith.constant 0 : i32
    %c0_i32_0 = arith.constant 0 : i32
    return %arg0, %c0_i32 : i32, i32
  }
}

</mosaic_0001>

<llo_original>
// kernel: tpu_custom_call.1
$region0: #{tpu_custom_call.1}
  #allocation0 [shape = 'u32[]', space=smem, size = 0x4, offset = 0x4, fixed_abs, tag = 'smem constant byte address 0x4 - core index']
  #allocation1 [shape = 'u32[144,128]{1,0:T(1,128)}', space=vmem, size = 0x12000, scoped, tag = 'internal scratch']
  %s0 = inlined_call_operand.vmem [shape: f32[8,32], index: 0, kind: input, shape index: {}]
  %s1 = inlined_call_operand.hbm [shape: f32[32,32], index: 1, kind: input, shape index: {}]
  %s2 = inlined_call_operand.hbm [shape: f32[32,64], index: 2, kind: input, shape index: {}]
  %s3 = inlined_call_operand.vmem [shape: f32[64,64], index: 3, kind: input, shape index: {}]
  %s4 = inlined_call_operand.vmem [shape: f32[64,6], index: 4, kind: input, shape index: {}]
  %s5 = inlined_call_operand.vmem [shape: f32[4,128], index: 5, kind: input, shape index: {}]
  %s6 = inlined_call_operand.hbm [shape: f32[8,6], index: 6, kind: output, shape index: {}]
  %s7 = sld [smem:[#allocation0]]
  $region42: #{tpu_custom_call.1} parent=0
    _
  %s9 = ssub.s32 1, %s7
  %s10 = scalar_select 0, %s9, %s7
  $region1: #{tpu_custom_call.1} parent=0
    #allocation2 [shape = 'u8[16384]{0}', space=vmem, size = 0x4000, scoped, tag = 'input window, operand 1, single buffered']
    #allocation3 [shape = 's32[1]{0}', space=sflag, size = 0x4, scoped, tag = 'scoped memory for tpu_custom_call.1']
    #allocation4 [shape = 's32[1]{0}', space=sflag, size = 0x4, scoped, tag = 'scoped memory for tpu_custom_call.1']
    #allocation5 [shape = 'u8[16384]{0}', space=vmem, size = 0x4000, scoped, tag = 'input window, operand 2, single buffered']
    #allocation6 [shape = 's32[1]{0}', space=sflag, size = 0x4, scoped, tag = 'scoped memory for tpu_custom_call.1']
    #allocation7 [shape = 'u8[4096]{0}', space=vmem, size = 0x1000, scoped, tag = 'output window, operand 0, single buffered']
    %11 = vsyncpa [#allocation3], 0
    %12 = vsyncpa [#allocation6], 0
    %13 = vsyncpa [#allocation4], 0
    // Predicated region
    $region2: #{tpu_custom_call.1} parent=1 // pred_check
      _
    $region3: #{tpu_custom_call.1} parent=1 // pred_check_branch
      %15 = sbr.rel (0) target = $region5
    $region4: #{tpu_custom_call.1} parent=1 // pred_region
      _
    $region5: #{tpu_custom_call.1} parent=1 // pred_fallthru
      _
    // Predicated region
    $region6: #{tpu_custom_call.1} parent=1 // pred_check
      _
    $region7: #{tpu_custom_call.1} parent=1 // pred_check_branch
      %17 = sbr.rel (0) target = $region9
    $region8: #{tpu_custom_call.1} parent=1 // pred_region
      %s19 = ssub.s32 512, 512
      %20 = vsyncadd [#allocation3], %s19
      %s21 = sshll.u32 [#allocation2], 4
      %s22 = int_to_ptr.vmem [resolvable:$true] %s21
      %27 = dma.hbm_to_vmem [thread:$0]  %s1, 512, %s22, [#allocation3], 128, 128, 8
    $region9: #{tpu_custom_call.1} parent=1 // pred_fallthru
      _
    // Predicated region
    $region10: #{tpu_custom_call.1} parent=1 // pred_check
      _
    $region11: #{tpu_custom_call.1} parent=1 // pred_check_branch
      %29 = sbr.rel (0) target = $region13
    $region12: #{tpu_custom_call.1} parent=1 // pred_region
      %s31 = ssub.s32 512, 512
      %32 = vsyncadd [#allocation6], %s31
      %s33 = sshll.u32 [#allocation5], 4
      %s34 = int_to_ptr.vmem [resolvable:$true] %s33
      %39 = dma.hbm_to_vmem [thread:$0]  %s2, 512, %s34, [#allocation6], 128, 128, 8
    $region13: #{tpu_custom_call.1} parent=1 // pred_fallthru
      _
    // Predicated region
    $region14: #{tpu_custom_call.1} parent=1 // pred_check
      _
    $region15: #{tpu_custom_call.1} parent=1 // pred_check_branch
      %41 = sbr.rel (0) target = $region17
    $region16: #{tpu_custom_call.1} parent=1 // pred_region
      _
    $region17: #{tpu_custom_call.1} parent=1 // pred_fallthru
      _
    // Predicated region
    $region18: #{tpu_custom_call.1} parent=1 // pred_check
      _
    $region19: #{tpu_custom_call.1} parent=1 // pred_check_branch
      %43 = sbr.rel (0) target = $region21
    $region20: #{tpu_custom_call.1} parent=1 // pred_region
      _
    $region21: #{tpu_custom_call.1} parent=1 // pred_fallthru
      _
    // Predicated region
    $region22: #{tpu_custom_call.1} parent=1 // pred_check
      _
    $region23: #{tpu_custom_call.1} parent=1 // pred_check_branch
      %45 = sbr.rel (0) target = $region25
    $region24: #{tpu_custom_call.1} parent=1 // pred_region
      _
    $region25: #{tpu_custom_call.1} parent=1 // pred_fallthru
      _
    // Predicated region
    $region26: #{tpu_custom_call.1} parent=1 // pred_check
      _
    $region27: #{tpu_custom_call.1} parent=1 // pred_check_branch
      %47 = sbr.rel (0) target = $region29
    $region28: #{tpu_custom_call.1} parent=1 // pred_region
      %48 = dma.done [#allocation3], 512
    $region29: #{tpu_custom_call.1} parent=1 // pred_fallthru
      _
    // Predicated region
    $region30: #{tpu_custom_call.1} parent=1 // pred_check
      _
    $region31: #{tpu_custom_call.1} parent=1 // pred_check_branch
      %50 = sbr.rel (0) target = $region33
    $region32: #{tpu_custom_call.1} parent=1 // pred_region
      %51 = dma.done [#allocation6], 512
    $region33: #{tpu_custom_call.1} parent=1 // pred_fallthru
      _
    %v52 = vld [vmem:[%s5] sm:$0xf]
    %v53 = vld [vmem:[%s0] sm:$0xff]
    %v54 = vld [vmem:[#allocation2] sm:$0xff]
    %v55 = vld [vmem:[#allocation2 + $0x8] sm:$0xff]
    %v56 = vld [vmem:[#allocation2 + $0x10] sm:$0xff]
    %v57 = vld [vmem:[#allocation2 + $0x18] sm:$0xff]
    %v58 = vlaneseq
    %v59 = vshrl.u32 %v58, 7
    %v60 = vsub.s32 0, %v59
    %v61 = vrot.slane %v52, %v60
    %vm62 = vcmask 261120
    %v64 = vsel %vm62, %v53, 0
    %66 = vmatprep.subr.mxu0 0.0
    %67 = vmatpush1.msra.mxu0 %v54
    %68 = vmatprep.subr.mxu0 0.0
    %69 = vmatpush1.msra.mxu0 %v55
    %70 = vmatprep.subr.mxu0 0.0
    %71 = vmatpush1.msra.mxu0 %v56
    %72 = vmatprep.subr.mxu0 0.0
    %73 = vmatpush1.msra.mxu0 %v57
    %74 = vmatprep.subr.mxu0 0.0
    %75 = vmatpush1.msra.mxu0 0.0
    %76 = vmatprep.subr.mxu0 0.0
    %77 = vmatpush1.msra.mxu0 0.0
    %78 = vmatprep.subr.mxu0 0.0
    %79 = vmatpush1.msra.mxu0 0.0
    %80 = vmatprep.subr.mxu0 0.0
    %81 = vmatpush1.msra.mxu0 0.0
    %82 = vmatprep.subr.mxu0 0.0
    %83 = vmatpush1.msra.mxu0 0.0
    %84 = vmatprep.subr.mxu0 0.0
    %85 = vmatpush1.msra.mxu0 0.0
    %86 = vmatprep.subr.mxu0 0.0
    %87 = vmatpush1.msra.mxu0 0.0
    %88 = vmatprep.subr.mxu0 0.0
    %89 = vmatpush1.msra.mxu0 0.0
    %90 = vmatprep.subr.mxu0 0.0
    %91 = vmatpush1.msra.mxu0 0.0
    %92 = vmatprep.subr.mxu0 0.0
    %93 = vmatpush1.msra.mxu0 0.0
    %94 = vmatprep.subr.mxu0 0.0
    %95 = vmatpush1.msra.mxu0 0.0
    %96 = vmatprep.subr.mxu0 0.0
    %97 = vmatpush1.msra.mxu0 0.0
    %98 = vmatprep.subr.mxu0 0.0
    %99 = vmatpush1.msra.mxu0 0.0
    %100 = vmatprep.subr.mxu0 0.0
    %101 = vmatpush1.msra.mxu0 0.0
    %102 = vmatprep.subr.mxu0 0.0
    %103 = vmatpush1.msra.mxu0 0.0
    %104 = vmatprep.subr.mxu0 0.0
    %105 = vmatpush1.msra.mxu0 0.0
    %106 = vmatprep.subr.mxu0 0.0
    %107 = vmatpush1.msra.mxu0 0.0
    %108 = vmatprep.subr.mxu0 0.0
    %109 = vmatpush1.msra.mxu0 0.0
    %110 = vmatprep.subr.mxu0 0.0
    %111 = vmatpush1.msra.mxu0 0.0
    %112 = vmatprep.subr.mxu0 0.0
    %113 = vmatpush1.msra.mxu0 0.0
    %114 = vmatprep.subr.mxu0 0.0
    %115 = vmatpush1.msra.mxu0 0.0
    %116 = vmatprep.subr.mxu0 0.0
    %117 = vmatpush1.msra.mxu0 0.0
    %118 = vmatprep.subr.mxu0 0.0
    %119 = vmatpush1.msra.mxu0 0.0
    %120 = vmatprep.subr.mxu0 0.0
    %121 = vmatpush1.msra.mxu0 0.0
    %122 = vmatprep.subr.mxu0 0.0
    %123 = vmatpush1.msra.mxu0 0.0
    %124 = vmatprep.subr.mxu0 0.0
    %125 = vmatpush1.msra.mxu0 0.0
    %126 = vmatprep.subr.mxu0 0.0
    %127 = vmatpush1.msra.mxu0 0.0
    %128 = vmatprep.subr.mxu0 0.0
    %129 = vmatpush1.msra.mxu0 0.0
    %130 = vmatprep.mubr.f32.mxu0 0.0
    %131 = vmatmul.mubr.f32.gmra.mrb[0].mxu0 %v64
    %v132 = vpop.f32.mrb[0].mxu0
    %v133 = vadd.f32 %v61, %v132
    %v134 = vpop.f32.mrb[0].mxu0
    %135 = vdwg.mxu0
    %v136 = vmax.f32 %v133, 0.0
    %v137 = vld [vmem:[#allocation5] sm:$0xff]
    %v138 = vld [vmem:[#allocation5 + $0x8] sm:$0xff]
    %v139 = vld [vmem:[#allocation5 + $0x10] sm:$0xff]
    %v140 = vld [vmem:[#allocation5 + $0x18] sm:$0xff]
    %v141 = vlaneseq
    %v142 = vshrl.u32 %v141, 7
    %v143 = vsub.s32 1, %v142
    %v144 = vrot.slane %v52, %v143
    %v146 = vsel %vm62, %v136, 0
    %148 = vmatprep.subr.mxu0 0.0
    %149 = vmatpush1.msra.mxu0 %v137
    %150 = vmatprep.subr.mxu0 0.0
    %151 = vmatpush1.msra.mxu0 %v138
    %152 = vmatprep.subr.mxu0 0.0
    %153 = vmatpush1.msra.mxu0 %v139
    %154 = vmatprep.subr.mxu0 0.0
    %155 = vmatpush1.msra.mxu0 %v140
    %156 = vmatprep.subr.mxu0 0.0
    %157 = vmatpush1.msra.mxu0 0.0
    %158 = vmatprep.subr.mxu0 0.0
    %159 = vmatpush1.msra.mxu0 0.0
    %160 = vmatprep.subr.mxu0 0.0
    %161 = vmatpush1.msra.mxu0 0.0
    %162 = vmatprep.subr.mxu0 0.0
    %163 = vmatpush1.msra.mxu0 0.0
    %164 = vmatprep.subr.mxu0 0.0
    %165 = vmatpush1.msra.mxu0 0.0
    %166 = vmatprep.subr.mxu0 0.0
    %167 = vmatpush1.msra.mxu0 0.0
    %168 = vmatprep.subr.mxu0 0.0
    %169 = vmatpush1.msra.mxu0 0.0
    %170 = vmatprep.subr.mxu0 0.0
    %171 = vmatpush1.msra.mxu0 0.0
    %172 = vmatprep.subr.mxu0 0.0
    %173 = vmatpush1.msra.mxu0 0.0
    %174 = vmatprep.subr.mxu0 0.0
    %175 = vmatpush1.msra.mxu0 0.0
    %176 = vmatprep.subr.mxu0 0.0
    %177 = vmatpush1.msra.mxu0 0.0
    %178 = vmatprep.subr.mxu0 0.0
    %179 = vmatpush1.msra.mxu0 0.0
    %180 = vmatprep.subr.mxu0 0.0
    %181 = vmatpush1.msra.mxu0 0.0
    %182 = vmatprep.subr.mxu0 0.0
    %183 = vmatpush1.msra.mxu0 0.0
    %184 = vmatprep.subr.mxu0 0.0
    %185 = vmatpush1.msra.mxu0 0.0
    %186 = vmatprep.subr.mxu0 0.0
    %187 = vmatpush1.msra.mxu0 0.0
    %188 = vmatprep.subr.mxu0 0.0
    %189 = vmatpush1.msra.mxu0 0.0
    %190 = vmatprep.subr.mxu0 0.0
    %191 = vmatpush1.msra.mxu0 0.0
    %192 = vmatprep.subr.mxu0 0.0
    %193 = vmatpush1.msra.mxu0 0.0
    %194 = vmatprep.subr.mxu0 0.0
    %195 = vmatpush1.msra.mxu0 0.0
    %196 = vmatprep.subr.mxu0 0.0
    %197 = vmatpush1.msra.mxu0 0.0
    %198 = vmatprep.subr.mxu0 0.0
    %199 = vmatpush1.msra.mxu0 0.0
    %200 = vmatprep.subr.mxu0 0.0
    %201 = vmatpush1.msra.mxu0 0.0
    %202 = vmatprep.subr.mxu0 0.0
    %203 = vmatpush1.msra.mxu0 0.0
    %204 = vmatprep.subr.mxu0 0.0
    %205 = vmatpush1.msra.mxu0 0.0
    %206 = vmatprep.subr.mxu0 0.0
    %207 = vmatpush1.msra.mxu0 0.0
    %208 = vmatprep.subr.mxu0 0.0
    %209 = vmatpush1.msra.mxu0 0.0
    %210 = vmatprep.subr.mxu0 0.0
    %211 = vmatpush1.msra.mxu0 0.0
    %212 = vmatprep.mubr.f32.mxu0 0.0
    %213 = vmatmul.mubr.f32.gmra.mrb[0].mxu0 %v146
    %v214 = vpop.f32.mrb[0].mxu0
    %v215 = vadd.f32 %v144, %v214
    %v216 = vpop.f32.mrb[0].mxu0
    %217 = vdwg.mxu0
    %v218 = vmax.f32 %v215, 0.0
    %v219 = vld [vmem:[%s3] sm:$0xff]
    %v220 = vld [vmem:[%s3 + $0x8] sm:$0xff]
    %v221 = vld [vmem:[%s3 + $0x10] sm:$0xff]
    %v222 = vld [vmem:[%s3 + $0x18] sm:$0xff]
    %v223 = vld [vmem:[%s3 + $0x20] sm:$0xff]
    %v224 = vld [vmem:[%s3 + $0x28] sm:$0xff]
    %v225 = vld [vmem:[%s3 + $0x30] sm:$0xff]
    %v226 = vld [vmem:[%s3 + $0x38] sm:$0xff]
    %v227 = vlaneseq
    %v228 = vshrl.u32 %v227, 7
    %v229 = vsub.s32 2, %v228
    %v230 = vrot.slane %v52, %v229
    %vm231 = vcmask 523264
    %v233 = vsel %vm231, %v218, 0
    %235 = vmatprep.subr.mxu0 0.0
    %236 = vmatpush1.msra.mxu0 %v219
    %237 = vmatprep.subr.mxu0 0.0
    %238 = vmatpush1.msra.mxu0 %v220
    %239 = vmatprep.subr.mxu0 0.0
    %240 = vmatpush1.msra.mxu0 %v221
    %241 = vmatprep.subr.mxu0 0.0
    %242 = vmatpush1.msra.mxu0 %v222
    %243 = vmatprep.subr.mxu0 0.0
    %244 = vmatpush1.msra.mxu0 %v223
    %245 = vmatprep.subr.mxu0 0.0
    %246 = vmatpush1.msra.mxu0 %v224
    %247 = vmatprep.subr.mxu0 0.0
    %248 = vmatpush1.msra.mxu0 %v225
    %249 = vmatprep.subr.mxu0 0.0
    %250 = vmatpush1.msra.mxu0 %v226
    %251 = vmatprep.subr.mxu0 0.0
    %252 = vmatpush1.msra.mxu0 0.0
    %253 = vmatprep.subr.mxu0 0.0
    %254 = vmatpush1.msra.mxu0 0.0
    %255 = vmatprep.subr.mxu0 0.0
    %256 = vmatpush1.msra.mxu0 0.0
    %257 = vmatprep.subr.mxu0 0.0
    %258 = vmatpush1.msra.mxu0 0.0
    %259 = vmatprep.subr.mxu0 0.0
    %260 = vmatpush1.msra.mxu0 0.0
    %261 = vmatprep.subr.mxu0 0.0
    %262 = vmatpush1.msra.mxu0 0.0
    %263 = vmatprep.subr.mxu0 0.0
    %264 = vmatpush1.msra.mxu0 0.0
    %265 = vmatprep.subr.mxu0 0.0
    %266 = vmatpush1.msra.mxu0 0.0
    %267 = vmatprep.subr.mxu0 0.0
    %268 = vmatpush1.msra.mxu0 0.0
    %269 = vmatprep.subr.mxu0 0.0
    %270 = vmatpush1.msra.mxu0 0.0
    %271 = vmatprep.subr.mxu0 0.0
    %272 = vmatpush1.msra.mxu0 0.0
    %273 = vmatprep.subr.mxu0 0.0
    %274 = vmatpush1.msra.mxu0 0.0
    %275 = vmatprep.subr.mxu0 0.0
    %276 = vmatpush1.msra.mxu0 0.0
    %277 = vmatprep.subr.mxu0 0.0
    %278 = vmatpush1.msra.mxu0 0.0
    %279 = vmatprep.subr.mxu0 0.0
    %280 = vmatpush1.msra.mxu0 0.0
    %281 = vmatprep.subr.mxu0 0.0
    %282 = vmatpush1.msra.mxu0 0.0
    %283 = vmatprep.subr.mxu0 0.0
    %284 = vmatpush1.msra.mxu0 0.0
    %285 = vmatprep.subr.mxu0 0.0
    %286 = vmatpush1.msra.mxu0 0.0
    %287 = vmatprep.subr.mxu0 0.0
    %288 = vmatpush1.msra.mxu0 0.0
    %289 = vmatprep.subr.mxu0 0.0
    %290 = vmatpush1.msra.mxu0 0.0
    %291 = vmatprep.subr.mxu0 0.0
    %292 = vmatpush1.msra.mxu0 0.0
    %293 = vmatprep.subr.mxu0 0.0
    %294 = vmatpush1.msra.mxu0 0.0
    %295 = vmatprep.subr.mxu0 0.0
    %296 = vmatpush1.msra.mxu0 0.0
    %297 = vmatprep.subr.mxu0 0.0
    %298 = vmatpush1.msra.mxu0 0.0
    %299 = vmatprep.mubr.f32.mxu0 0.0
    %300 = vmatmul.mubr.f32.gmra.mrb[0].mxu0 %v233
    %v301 = vpop.f32.mrb[0].mxu0
    %v302 = vadd.f32 %v230, %v301
    %v303 = vpop.f32.mrb[0].mxu0
    %304 = vdwg.mxu0
    %v305 = vmax.f32 %v302, 0.0
    %v306 = vld [vmem:[%s4] sm:$0xff]
    %v307 = vld [vmem:[%s4 + $0x8] sm:$0xff]
    %v308 = vld [vmem:[%s4 + $0x10] sm:$0xff]
    %v309 = vld [vmem:[%s4 + $0x18] sm:$0xff]
    %v310 = vld [vmem:[%s4 + $0x20] sm:$0xff]
    %v311 = vld [vmem:[%s4 + $0x28] sm:$0xff]
    %v312 = vld [vmem:[%s4 + $0x30] sm:$0xff]
    %v313 = vld [vmem:[%s4 + $0x38] sm:$0xff]
    %v314 = vlaneseq
    %v315 = vshrl.u32 %v314, 7
    %v316 = vsub.s32 3, %v315
    %v317 = vrot.slane %v52, %v316
    %v319 = vsel %vm231, %v305, 0
    %321 = vmatprep.subr.mxu0 0.0
    %322 = vmatpush1.msra.mxu0 %v306
    %323 = vmatprep.subr.mxu0 0.0
    %324 = vmatpush1.msra.mxu0 %v307
    %325 = vmatprep.subr.mxu0 0.0
    %326 = vmatpush1.msra.mxu0 %v308
    %327 = vmatprep.subr.mxu0 0.0
    %328 = vmatpush1.msra.mxu0 %v309
    %329 = vmatprep.subr.mxu0 0.0
    %330 = vmatpush1.msra.mxu0 %v310
    %331 = vmatprep.subr.mxu0 0.0
    %332 = vmatpush1.msra.mxu0 %v311
    %333 = vmatprep.subr.mxu0 0.0
    %334 = vmatpush1.msra.mxu0 %v312
    %335 = vmatprep.subr.mxu0 0.0
    %336 = vmatpush1.msra.mxu0 %v313
    %337 = vmatprep.subr.mxu0 0.0
    %338 = vmatpush1.msra.mxu0 0.0
    %339 = vmatprep.subr.mxu0 0.0
    %340 = vmatpush1.msra.mxu0 0.0
    %341 = vmatprep.subr.mxu0 0.0
    %342 = vmatpush1.msra.mxu0 0.0
    %343 = vmatprep.subr.mxu0 0.0
    %344 = vmatpush1.msra.mxu0 0.0
    %345 = vmatprep.subr.mxu0 0.0
    %346 = vmatpush1.msra.mxu0 0.0
    %347 = vmatprep.subr.mxu0 0.0
    %348 = vmatpush1.msra.mxu0 0.0
    %349 = vmatprep.subr.mxu0 0.0
    %350 = vmatpush1.msra.mxu0 0.0
    %351 = vmatprep.subr.mxu0 0.0
    %352 = vmatpush1.msra.mxu0 0.0
    %353 = vmatprep.subr.mxu0 0.0
    %354 = vmatpush1.msra.mxu0 0.0
    %355 = vmatprep.subr.mxu0 0.0
    %356 = vmatpush1.msra.mxu0 0.0
    %357 = vmatprep.subr.mxu0 0.0
    %358 = vmatpush1.msra.mxu0 0.0
    %359 = vmatprep.subr.mxu0 0.0
    %360 = vmatpush1.msra.mxu0 0.0
    %361 = vmatprep.subr.mxu0 0.0
    %362 = vmatpush1.msra.mxu0 0.0
    %363 = vmatprep.subr.mxu0 0.0
    %364 = vmatpush1.msra.mxu0 0.0
    %365 = vmatprep.subr.mxu0 0.0
    %366 = vmatpush1.msra.mxu0 0.0
    %367 = vmatprep.subr.mxu0 0.0
    %368 = vmatpush1.msra.mxu0 0.0
    %369 = vmatprep.subr.mxu0 0.0
    %370 = vmatpush1.msra.mxu0 0.0
    %371 = vmatprep.subr.mxu0 0.0
    %372 = vmatpush1.msra.mxu0 0.0
    %373 = vmatprep.subr.mxu0 0.0
    %374 = vmatpush1.msra.mxu0 0.0
    %375 = vmatprep.subr.mxu0 0.0
    %376 = vmatpush1.msra.mxu0 0.0
    %377 = vmatprep.subr.mxu0 0.0
    %378 = vmatpush1.msra.mxu0 0.0
    %379 = vmatprep.subr.mxu0 0.0
    %380 = vmatpush1.msra.mxu0 0.0
    %381 = vmatprep.subr.mxu0 0.0
    %382 = vmatpush1.msra.mxu0 0.0
    %383 = vmatprep.subr.mxu0 0.0
    %384 = vmatpush1.msra.mxu0 0.0
    %385 = vmatprep.mubr.f32.mxu0 0.0
    %386 = vmatmul.mubr.f32.gmra.mrb[0].mxu0 %v319
    %v387 = vpop.f32.mrb[0].mxu0
    %v388 = vadd.f32 %v317, %v387
    %v389 = vpop.f32.mrb[0].mxu0
    %390 = vdwg.mxu0
    %vm391 = vcmask 48128
    %392 = vst.msk [vmem:[#allocation7] sm:$0xff] %vm391, %v388
    // Predicated region
    $region34: #{tpu_custom_call.1} parent=1 // pred_check
      _
    $region35: #{tpu_custom_call.1} parent=1 // pred_check_branch
      %394 = sbr.rel (0) target = $region37
    $region36: #{tpu_custom_call.1} parent=1 // pred_region
      %s396 = ssub.s32 128, 128
      %397 = vsyncadd [#allocation4], %s396
      %s399 = sshll.u32 [#allocation7], 4
      %s400 = int_to_ptr.vmem [resolvable:$true] %s399
      %402 = dma.vmem_to_hbm [thread:$0]  %s400, 128, %s6, [#allocation4]
    $region37: #{tpu_custom_call.1} parent=1 // pred_fallthru
      _
    // Predicated region
    $region38: #{tpu_custom_call.1} parent=1 // pred_check
      _
    $region39: #{tpu_custom_call.1} parent=1 // pred_check_branch
      %404 = sbr.rel (0) target = $region41
    $region40: #{tpu_custom_call.1} parent=1 // pred_region
      %405 = dma.done [#allocation4], 128
    $region41: #{tpu_custom_call.1} parent=1 // pred_fallthru
      _
    %406 = vsyncpa [#allocation3], 1
    %407 = vsyncpa [#allocation6], 1
    %408 = vsyncpa [#allocation4], 1

</llo_original>
